<compile_context>
chip_gen: v7x
topology: tpu7x:2x2x1
jax: 0.10.0
libtpu: 0.0.40
codegen_flags: <defaults>
</compile_context>

<pallas_src>
import math

import jax
import jax.numpy as jnp
from jax.experimental import pallas as pl
from jax.experimental.pallas import tpu as pltpu


_NEG_INF = float("-inf")


# ---------------------------------------------------------------------------
# Kernels
# ---------------------------------------------------------------------------
# Every kernel emits two outputs:
#   out_ref : per-sample log-probabilities (lane/row packed, see wrapper)
#   max_ref : (1, 128) per-grid-step max; padded / DMA-clipped samples are
#             masked with -inf so the fused max never sees garbage rows.


def _tril_logprob_kernel(const_ref, n_ref, x_ref, mean_ref, linvt_ref,
                         out_ref, max_ref):
    # Full covariance via scale_tril L:  log p = -0.5*||L^{-1}(x-mu)||^2 + const
    diff = x_ref[...] - mean_ref[...]                              # (tn, D)
    # linvt may be bf16 for large D (MXU rate + halved VMEM residency).
    # TODO(synk): for D >= ~4096 (Linv^T alone ~VMEM-sized on v7x) K-block this
    # whitening matmul over D with an f32 accumulator instead of keeping
    # Linv^T fully resident.
    z = jnp.dot(diff.astype(linvt_ref.dtype), linvt_ref[...],
                preferred_element_type=jnp.float32)                # (tn, D)
    maha = jnp.sum(z * z, axis=-1)                                 # (tn,)
    res = (-0.5 * maha + const_ref[0]).reshape(out_ref.shape)      # (1, tn)
    out_ref[...] = res
    tn = out_ref.shape[1]
    idx = (pl.program_id(0) * tn
           + jax.lax.broadcasted_iota(jnp.int32, (1, tn), 1))
    masked = jnp.where(idx < n_ref[0], res, _NEG_INF)
    max_ref[...] = jnp.broadcast_to(
        jnp.max(masked, axis=1, keepdims=True), max_ref.shape)


def _diag_logprob_kernel(const_ref, n_ref, x_ref, mean_ref, invvar_ref,
                         out_ref, max_ref):
    # Diagonal covariance, generic row-per-sample layout (128 % D != 0 case).
    diff = x_ref[...] - mean_ref[...]                              # (tn, D)
    maha = jnp.sum(diff * diff * invvar_ref[...], axis=-1)         # (tn,)
    res = (-0.5 * maha + const_ref[0]).reshape(out_ref.shape)      # (1, tn)
    out_ref[...] = res
    tn = out_ref.shape[1]
    idx = (pl.program_id(0) * tn
           + jax.lax.broadcasted_iota(jnp.int32, (1, tn), 1))
    masked = jnp.where(idx < n_ref[0], res, _NEG_INF)
    max_ref[...] = jnp.broadcast_to(
        jnp.max(masked, axis=1, keepdims=True), max_ref.shape)


def _packed_tile_max(res, n_ref, max_ref):
    # res: (rows, k) log-probs of samples (row*k + col); mask pad/clip rows.
    rows, k = res.shape
    r_io = jax.lax.broadcasted_iota(jnp.int32, (rows, k), 0)
    j_io = jax.lax.broadcasted_iota(jnp.int32, (rows, k), 1)
    idx = (pl.program_id(0) * rows + r_io) * k + j_io
    masked = jnp.where(idx < n_ref[0], res, _NEG_INF)
    m = jnp.max(jnp.max(masked, axis=1, keepdims=True), axis=0, keepdims=True)
    max_ref[...] = jnp.broadcast_to(m, max_ref.shape)


def _diag_packed_kernel(const_ref, n_ref, xp_ref, meanp_ref, sel_ref,
                        out_ref, max_ref):
    # k = 128 // D samples per 128-lane row; 1/var folded into the selector.
    diff = xp_ref[...] - meanp_ref[...]                            # (rows, 128)
    maha = jnp.dot(diff * diff, sel_ref[...],
                   preferred_element_type=jnp.float32)             # (rows, k)
    res = -0.5 * maha + const_ref[0]
    # TODO(synk): reshape res to a lane-dense (rows*k//128, 128) slab before the
    # store to avoid k*4-byte masked writebacks (moderate win; measure first).
    out_ref[...] = res
    _packed_tile_max(res, n_ref, max_ref)


def _tril_packed_kernel(const_ref, n_ref, xp_ref, meanp_ref, wblk_ref, sel_ref,
                        out_ref, max_ref):
    # Block-diagonal replication of Linv^T whitens k packed samples with a
    # single (rows,128)@(128,128) MXU op; the 0/1 selector reduces segments.
    diff = xp_ref[...] - meanp_ref[...]                            # (rows, 128)
    z = jnp.dot(diff, wblk_ref[...],
                preferred_element_type=jnp.float32)                # (rows, 128)
    maha = jnp.dot(z * z, sel_ref[...],
                   preferred_element_type=jnp.float32)             # (rows, k)
    res = -0.5 * maha + const_ref[0]
    out_ref[...] = res
    _packed_tile_max(res, n_ref, max_ref)


# ---------------------------------------------------------------------------
# Wrapper
# ---------------------------------------------------------------------------

def _round_up(a, b):
    return ((a + b - 1) // b) * b


def _vmem_capacity_bytes():
    # Per-TensorCore VMEM; fall back to 64 MiB (v7x, smallest of the supported
    # generations) when the query is unavailable at trace time.
    try:
        cap = int(getattr(pltpu.get_tpu_info(), "vmem_capacity_bytes", 0))
        if cap > 0:
            return cap
    except Exception:
        pass
    return 64 * 1024 * 1024


def _compiler_params(vmem_bytes_est, vmem_budget):
    # Never request the full physical VMEM (review: 64 MiB cap == v7x per-TC
    # budget leaves no headroom); floor at 32 MiB (raises v5e's 16 MiB scoped
    # default, matches v6e/v7x defaults).
    limit = int(min(vmem_budget,
                    max(32 * 1024 * 1024, 2 * int(vmem_bytes_est))))
    return pltpu.CompilerParams(
        dimension_semantics=("parallel",),
        vmem_limit_bytes=limit)


def gaussian_log_prob(x, mean, cov, *, target_step_bytes=2 * 1024 * 1024,
                      whiten_in_bf16=None):
    """Returns (log_probs[N], batch_max[]) for a MultivariateNormal.

    cov.ndim == 2  -> scale_tril = tril(cov)   (torch semantics)
    cov.ndim == 1  -> covariance = diag(cov)
    """
    x = jnp.asarray(x, jnp.float32)
    N, D = x.shape
    mean = jnp.asarray(mean, jnp.float32)
    cov = jnp.asarray(cov, jnp.float32)

    if N == 0:
        return jnp.zeros((0,), jnp.float32), jnp.float32(-jnp.inf)

    const_base = -0.5 * D * math.log(2.0 * math.pi)
    full_cov = (cov.ndim == 2)

    if full_cov:
        L = jnp.tril(cov)
        linvt = jax.scipy.linalg.solve_triangular(
            L, jnp.eye(D, dtype=jnp.float32), lower=True).T        # (L^{-1})^T
        # NOTE: matches torch semantics -- a non-positive diagonal in the
        # provided scale_tril silently yields NaN/-inf, same as the reference.
        log_det = jnp.sum(jnp.log(jnp.diagonal(L)))
    else:
        inv = 1.0 / cov
        log_det = 0.5 * jnp.sum(jnp.log(cov))

    const = jnp.reshape(const_base - log_det, (1,)).astype(jnp.float32)
    nvalid = jnp.array([N], dtype=jnp.int32)

    smem_spec = pl.BlockSpec(memory_space=pltpu.MemorySpace.SMEM)
    vmem_budget = int(0.75 * _vmem_capacity_bytes())   # headroom below physical

    # ---------------- lane-packed path (small D: diag AND tril) -------------
    if 0 < D < 128 and 128 % D == 0:
        k = 128 // D
        pad = (-N) % k
        if pad:
            # <= k-1 zero rows keep ragged batches on the packed fast path.
            # TODO(synk): jnp.pad materializes a copy of x; for very large
            # ragged N split the < k tail into a tiny epilogue instead.
            x = jnp.pad(x, ((0, pad), (0, 0)))
        n_rows = (N + pad) // k

        # ~2 MiB of x per grid step (rows*512 B) amortizes the ~0.35 us step
        # overhead even on v7x's 3.2 TB/s HBM; VMEM guard: x + lane-padded out,
        # both double-buffered, ~2 KiB per packed row.
        rows = max(8, min(_round_up(target_step_bytes // 512, 8),
                          _round_up(n_rows, 8)))
        rows_cap = max(8, ((vmem_budget // 2) // 2048 // 8) * 8)
        rows = min(rows, rows_cap)
        num_tiles = pl.cdiv(n_rows, rows)

        xp = x.reshape(n_rows, k * D)               # free row-major reshape
        meanp = jnp.tile(mean, k).reshape(1, k * D)

        if full_cov:
            wblk = jnp.kron(jnp.eye(k, dtype=jnp.float32), linvt)   # (128,128)
            sel = jnp.repeat(jnp.eye(k, dtype=jnp.float32), D, axis=0)
            kernel = _tril_packed_kernel
            mats = (wblk, sel)
            mat_specs = [pl.BlockSpec((k * D, k * D), lambda i: (0, 0)),
                         pl.BlockSpec((k * D, k), lambda i: (0, 0))]
            flops = n_rows * (2 * 128 * 128 + 2 * 128 * k + 4 * 128)
        else:
            sel = (jnp.repeat(jnp.eye(k, dtype=jnp.float32), D, axis=0)
                   * jnp.tile(inv, k)[:, None])                     # (128, k)
            kernel = _diag_packed_kernel
            mats = (sel,)
            mat_specs = [pl.BlockSpec((k * D, k), lambda i: (0, 0))]
            flops = n_rows * (2 * 128 * k + 4 * 128)

        bytes_acc = n_rows * 128 * 4 + n_rows * k * 4 + (128 * 128 + 128 * k) * 4
        vmem_est = 4 * rows * 512 + 4 * rows * 512 + 4 * (128 * 128 + 128 * k) * 4

        out, maxes = pl.pallas_call(
            kernel,
            out_shape=(jax.ShapeDtypeStruct((n_rows, k), jnp.float32),
                       jax.ShapeDtypeStruct((1, num_tiles * 128), jnp.float32)),
            grid=(num_tiles,),
            in_specs=[smem_spec, smem_spec,
                      pl.BlockSpec((rows, k * D), lambda i: (i, 0)),
                      pl.BlockSpec((1, k * D), lambda i: (0, 0))] + mat_specs,
            out_specs=[pl.BlockSpec((rows, k), lambda i: (i, 0)),
                       pl.BlockSpec((1, 128), lambda i: (0, i))],
            compiler_params=_compiler_params(vmem_est, vmem_budget),
            cost_estimate=pl.CostEstimate(flops=int(flops), transcendentals=0,
                                          bytes_accessed=int(bytes_acc)),
        )(const, nvalid, xp, meanp, *mats)
        return out.reshape(-1)[:N], jnp.max(maxes)

    # ---------------- general row-per-sample path (D >= 128, or 128 % D) ----
    if full_cov:
        if whiten_in_bf16 is None:
            whiten_in_bf16 = D >= 1024    # compute-bound regime: bf16 MXU rate,
                                          # halves resident Linv^T (v6e/v7x)
        mat = linvt.astype(jnp.bfloat16) if whiten_in_bf16 else linvt
        mat_block = (D, D)
        mat_vmem = _round_up(D, 8) * _round_up(D, 128) * mat.dtype.itemsize
        kernel = _tril_logprob_kernel
        flops_per_row = 2 * D * D + 4 * D
    else:
        mat = inv.reshape(1, D)
        mat_block = (1, D)
        mat_vmem = 8 * _round_up(D, 128) * 4
        kernel = _diag_logprob_kernel
        flops_per_row = 5 * D

    # tn from a ~2 MiB HBM target, capped by what fits in VMEM once the
    # (possibly large) resident whitening matrix and lane padding are counted.
    lane_row_bytes = _round_up(D, 128) * 4          # VMEM footprint of one row
    usable = max(vmem_budget - 2 * mat_vmem - (1 << 20), 2 << 20)
    tn_cap = usable // (2 * lane_row_bytes + 64)    # x + (1,tn) out, dbl-buffered
    tn = _round_up(max(target_step_bytes // (D * 4), 256), 256)
    tn = min(tn, max(256, (tn_cap // 256) * 256))
    tn = min(tn, _round_up(N, 256))
    num_tiles = pl.cdiv(N, tn)

    vmem_est = 2 * tn * lane_row_bytes + 2 * 8 * tn * 4 + 2 * mat_vmem + (1 << 20)
    bytes_acc = N * D * 4 + N * 4 + int(mat.size) * mat.dtype.itemsize
    flops = N * flops_per_row

    out, maxes = pl.pallas_call(
        kernel,
        out_shape=(jax.ShapeDtypeStruct((1, num_tiles * tn), jnp.float32),
                   jax.ShapeDtypeStruct((1, num_tiles * 128), jnp.float32)),
        grid=(num_tiles,),
        in_specs=[smem_spec, smem_spec,
                  pl.BlockSpec((tn, D), lambda i: (i, 0)),     # ragged tile clipped
                  pl.BlockSpec((1, D), lambda i: (0, 0)),
                  pl.BlockSpec(mat_block, lambda i: (0, 0))],
        out_specs=[pl.BlockSpec((1, tn), lambda i: (0, i)),    # lane-dense slab
                   pl.BlockSpec((1, 128), lambda i: (0, i))],
        compiler_params=_compiler_params(vmem_est, vmem_budget),
        cost_estimate=pl.CostEstimate(flops=int(flops), transcendentals=0,
                                      bytes_accessed=int(bytes_acc)),
    )(const, nvalid, x, mean.reshape(1, D), mat)

    # Garbage from ragged-last-tile rows lands at columns >= N: sliced off
    # (and already masked out of the fused max inside the kernel).
    return out.reshape(-1)[:N], jnp.max(maxes)


class GaussianComponent:
    """JAX/Pallas port of the PyTorch GaussianComponent forward pass."""

    def __init__(self, mean, cov):
        self.mean = jnp.asarray(mean, jnp.float32)
        self.cov = jnp.asarray(cov, jnp.float32)
        # Running max kept on device; host sync deferred to get_max()/max.
        self._max_dev = jnp.array(-jnp.inf, dtype=jnp.float32)

    def forward(self, x_batch):
        probs, batch_max = gaussian_log_prob(x_batch, self.mean, self.cov)
        # batch_max is produced inside the kernel (per-tile fused max), so no
        # extra full-N HBM read pass happens here.
        self._max_dev = jnp.maximum(self._max_dev, batch_max)
        return probs

    def get_statistics(self):
        return (self.mean, self.cov)

    def clamp_cov(self, cov_min):
        # Host-side parameter bookkeeping, plain JAX (no kernel needed).
        cov = jnp.nan_to_num(self.cov, nan=cov_min)
        if cov.ndim == 2:
            d = jnp.maximum(jnp.diagonal(cov), cov_min)
            cov = jnp.maximum(cov, -cov_min)
            idx = jnp.arange(cov.shape[0])
            cov = cov.at[idx, idx].set(d)
        else:
            cov = jnp.maximum(cov, cov_min)
        self.cov = cov

    def get_max(self):
        return float(self._max_dev)

    @property
    def max(self):
        return float(self._max_dev)


# ---------------------------------------------------------------------------
# Pure-JAX reference for correctness checking
# ---------------------------------------------------------------------------

def _ref_log_prob(x, mean, cov):
    D = x.shape[1]
    diff = x - mean[None, :]
    if cov.ndim == 2:
        L = jnp.tril(cov)
        z = jax.scipy.linalg.solve_triangular(L, diff.T, lower=True).T
        return (-0.5 * jnp.sum(z * z, axis=-1)
                - 0.5 * D * jnp.log(2.0 * jnp.pi)
                - jnp.sum(jnp.log(jnp.diagonal(L))))
    else:
        return (-0.5 * jnp.sum(diff * diff / cov[None, :], axis=-1)
                - 0.5 * D * jnp.log(2.0 * jnp.pi)
                - 0.5 * jnp.sum(jnp.log(cov)))


if __name__ == "__main__":
    key = jax.random.PRNGKey(0)

    def make_case(subkey, N, D):
        km, kt, kd, kx = jax.random.split(subkey, 4)
        mean = jax.random.normal(km, (D,), jnp.float32)
        A = 0.1 * jax.random.normal(kt, (D, D), jnp.float32)
        cov_tril = jnp.tril(A) + jnp.diag(
            jnp.abs(jnp.diagonal(A)) + 0.5 - jnp.diagonal(jnp.tril(A)))
        cov_diag = jnp.abs(jax.random.normal(kd, (D,), jnp.float32)) + 0.5
        x = jax.random.normal(kx, (N, D), jnp.float32)
        return mean, cov_tril, cov_diag, x

    k1, k2, k3 = jax.random.split(key, 3)
    cases = []
    # D=8  -> lane-packed path (tril & diag), aligned N
    mean8, tril8, diag8, x8 = make_case(k1, 256, 8)
    cases += [("tril-packed", mean8, tril8, x8),
              ("diag-packed", mean8, diag8, x8)]
    # D=8, ragged N -> packed path with <k pad rows
    mean8r, tril8r, diag8r, x8r = make_case(k2, 250, 8)
    cases += [("tril-packed-ragged", mean8r, tril8r, x8r),
              ("diag-packed-ragged", mean8r, diag8r, x8r)]
    # D=12 (128 % 12 != 0) -> general path, ragged tile + fused max masking
    mean12, tril12, diag12, x12 = make_case(k3, 300, 12)
    cases += [("tril-general", mean12, tril12, x12),
              ("diag-general", mean12, diag12, x12)]

    for name, mean, cov, xb in cases:
        comp = GaussianComponent(mean, cov)
        probs = comp.forward(xb)
        jax.block_until_ready(probs)
        ref = _ref_log_prob(xb, mean, cov)
        assert probs.shape == (xb.shape[0],), f"{name}: bad output shape"
        assert jnp.allclose(probs, ref, rtol=2e-4, atol=5e-4), \
            f"{name}: log_prob mismatch"
        ref_max = float(jnp.max(ref))
        assert abs(comp.get_max() - ref_max) < 1e-3, \
            f"{name}: fused running max mismatch"

    print("KERNEL_OK")
</pallas_src>

<mosaic_0001>
module attributes {stable_mosaic.version = 11 : i64} {
  func.func @_tril_packed_kernel(%arg0: i32, %arg1: memref<1xf32, #tpu.memory_space<smem>>, %arg2: memref<1xi32, #tpu.memory_space<smem>>, %arg3: memref<16x128xf32, #tpu.memory_space<vmem>>, %arg4: memref<1x128xf32, #tpu.memory_space<vmem>>, %arg5: memref<128x128xf32, #tpu.memory_space<vmem>>, %arg6: memref<128x16xf32, #tpu.memory_space<vmem>>, %arg7: memref<16x16xf32, #tpu.memory_space<vmem>>, %arg8: memref<1x128xf32, #tpu.memory_space<vmem>>) attributes {dimension_semantics = [#tpu.dimension_semantics<parallel>], iteration_bounds = array<i64: 1>, scalar_prefetch = 0 : i64, scratch_operands = 0 : i64, tpu.core_type = #tpu.core_type<tc>, window_params = [{transform_indices = @transform_0, window_bounds = array<i64: 1>}, {transform_indices = @transform_1, window_bounds = array<i64: 1>}, {transform_indices = @transform_2, window_bounds = array<i64: 16, 128>}, {pipeline_mode = #tpu.pipeline_mode<synchronous>, transform_indices = @transform_3, window_bounds = array<i64: 1, 128>}, {pipeline_mode = #tpu.pipeline_mode<synchronous>, transform_indices = @transform_4, window_bounds = array<i64: 128, 128>}, {pipeline_mode = #tpu.pipeline_mode<synchronous>, transform_indices = @transform_5, window_bounds = array<i64: 128, 16>}, {transform_indices = @transform_6, window_bounds = array<i64: 16, 16>}, {transform_indices = @transform_7, window_bounds = array<i64: 1, 128>}]} {
    %c0 = arith.constant 0 : index
    %c0_0 = arith.constant 0 : index
    %0 = vector.load %arg3[%c0, %c0_0] : memref<16x128xf32, #tpu.memory_space<vmem>>, vector<16x128xf32>
    %c0_1 = arith.constant 0 : index
    %c0_2 = arith.constant 0 : index
    %1 = vector.load %arg4[%c0_1, %c0_2] : memref<1x128xf32, #tpu.memory_space<vmem>>, vector<1x128xf32>
    %2 = vector.broadcast %1 : vector<1x128xf32> to vector<16x128xf32>
    %3 = arith.subf %0, %2 : vector<16x128xf32>
    %c0_3 = arith.constant 0 : index
    %c0_4 = arith.constant 0 : index
    %4 = vector.load %arg5[%c0_3, %c0_4] : memref<128x128xf32, #tpu.memory_space<vmem>>, vector<128x128xf32>
    %cst = arith.constant dense<0.000000e+00> : vector<16x128xf32>
    %5 = tpu.matmul %3, %4, %cst {dimension_numbers = #tpu.dot_dimension_numbers<[1], [0], [0], [1], [0, 0, 1, 1], [], []>} : vector<16x128xf32>, vector<128x128xf32>, vector<16x128xf32> -> vector<16x128xf32>
    %6 = arith.mulf %5, %5 : vector<16x128xf32>
    %c0_5 = arith.constant 0 : index
    %c0_6 = arith.constant 0 : index
    %7 = vector.load %arg6[%c0_5, %c0_6] : memref<128x16xf32, #tpu.memory_space<vmem>>, vector<128x16xf32>
    %cst_7 = arith.constant dense<0.000000e+00> : vector<16x16xf32>
    %8 = tpu.matmul %6, %7, %cst_7 {dimension_numbers = #tpu.dot_dimension_numbers<[1], [0], [0], [1], [0, 0, 1, 1], [], []>} : vector<16x128xf32>, vector<128x16xf32>, vector<16x16xf32> -> vector<16x16xf32>
    %cst_8 = arith.constant -5.000000e-01 : f32
    %9 = vector.broadcast %cst_8 : f32 to vector<16x16xf32>
    %10 = arith.mulf %9, %8 : vector<16x16xf32>
    %c0_9 = arith.constant 0 : index
    %11 = memref.load %arg1[%c0_9] : memref<1xf32, #tpu.memory_space<smem>>
    %12 = vector.broadcast %11 : f32 to vector<16x16xf32>
    %13 = arith.addf %10, %12 : vector<16x16xf32>
    %c0_10 = arith.constant 0 : index
    %c0_11 = arith.constant 0 : index
    %14 = vector.load %arg7[%c0_10, %c0_11] : memref<16x16xf32, #tpu.memory_space<vmem>>, vector<16x16xf32>
    tpu.vector_store %arg7[%c0_10, %c0_11], %13 {strides = array<i32>} : memref<16x16xf32, #tpu.memory_space<vmem>>, vector<16x16xf32>,
    %15 = tpu.iota {dimensions = array<i32: 0>} : vector<16x16xi32>
    %16 = tpu.iota {dimensions = array<i32: 1>} : vector<16x16xi32>
    %c16_i32 = arith.constant 16 : i32
    %17 = arith.muli %arg0, %c16_i32 : i32
    %18 = vector.broadcast %17 : i32 to vector<16x16xi32>
    %19 = arith.addi %18, %15 : vector<16x16xi32>
    %c16_i32_12 = arith.constant 16 : i32
    %20 = vector.broadcast %c16_i32_12 : i32 to vector<16x16xi32>
    %21 = arith.muli %19, %20 : vector<16x16xi32>
    %22 = arith.addi %21, %16 : vector<16x16xi32>
    %c0_13 = arith.constant 0 : index
    %23 = memref.load %arg2[%c0_13] : memref<1xi32, #tpu.memory_space<smem>>
    %24 = vector.broadcast %23 : i32 to vector<16x16xi32>
    %25 = arith.cmpi slt, %22, %24 : vector<16x16xi32>
    %cst_14 = arith.constant 0xFF800000 : f32
    %26 = vector.broadcast %cst_14 : f32 to vector<16x16xf32>
    %27 = arith.select %25, %13, %26 : vector<16x16xi1>, vector<16x16xf32>
    %cst_15 = arith.constant dense<0xFF800000> : vector<16xf32>
    %28 = vector.multi_reduction <maximumf>, %27, %cst_15 [1] : vector<16x16xf32> to vector<16xf32>
    %29 = vector.shape_cast %28 : vector<16xf32> to vector<16x1xf32>
    %cst_16 = arith.constant dense<0xFF800000> : vector<1xf32>
    %30 = vector.multi_reduction <maximumf>, %29, %cst_16 [0] : vector<16x1xf32> to vector<1xf32>
    %31 = vector.shape_cast %30 : vector<1xf32> to vector<1x1xf32>
    %32 = vector.shape_cast %31 : vector<1x1xf32> to vector<1x1xf32>
    %33 = vector.broadcast %32 : vector<1x1xf32> to vector<1x128xf32>
    %c0_17 = arith.constant 0 : index
    %c0_18 = arith.constant 0 : index
    %34 = vector.load %arg8[%c0_17, %c0_18] : memref<1x128xf32, #tpu.memory_space<vmem>>, vector<1x128xf32>
    tpu.vector_store %arg8[%c0_17, %c0_18], %33 {strides = array<i32>} : memref<1x128xf32, #tpu.memory_space<vmem>>, vector<1x128xf32>,
    return
  }
  func.func @transform_0(%arg0: i32) -> i32 {
    %c0_i32 = arith.constant 0 : i32
    %c0_i32_0 = arith.constant 0 : i32
    return %c0_i32 : i32
  }
  func.func @transform_1(%arg0: i32) -> i32 {
    %c0_i32 = arith.constant 0 : i32
    %c0_i32_0 = arith.constant 0 : i32
    return %c0_i32 : i32
  }
  func.func @transform_2(%arg0: i32) -> (i32, i32) {
    %c0_i32 = arith.constant 0 : i32
    %c0_i32_0 = arith.constant 0 : i32
    return %arg0, %c0_i32 : i32, i32
  }
  func.func @transform_3(%arg0: i32) -> (i32, i32) {
    %c0_i32 = arith.constant 0 : i32
    %c0_i32_0 = arith.constant 0 : i32
    %c0_i32_1 = arith.constant 0 : i32
    return %c0_i32, %c0_i32_0 : i32, i32
  }
  func.func @transform_4(%arg0: i32) -> (i32, i32) {
    %c0_i32 = arith.constant 0 : i32
    %c0_i32_0 = arith.constant 0 : i32
    %c0_i32_1 = arith.constant 0 : i32
    return %c0_i32, %c0_i32_0 : i32, i32
  }
  func.func @transform_5(%arg0: i32) -> (i32, i32) {
    %c0_i32 = arith.constant 0 : i32
    %c0_i32_0 = arith.constant 0 : i32
    %c0_i32_1 = arith.constant 0 : i32
    return %c0_i32, %c0_i32_0 : i32, i32
  }
  func.func @transform_6(%arg0: i32) -> (i32, i32) {
    %c0_i32 = arith.constant 0 : i32
    %c0_i32_0 = arith.constant 0 : i32
    return %arg0, %c0_i32 : i32, i32
  }
  func.func @transform_7(%arg0: i32) -> (i32, i32) {
    %c0_i32 = arith.constant 0 : i32
    %c0_i32_0 = arith.constant 0 : i32
    return %c0_i32, %arg0 : i32, i32
  }
}

</mosaic_0001>

<llo_original>
// kernel: tpu_custom_call.1
$region0: #{tpu_custom_call.1}
  #allocation0 [shape = 'u32[]', space=smem, size = 0x4, offset = 0x4, fixed_abs, tag = 'smem constant byte address 0x4 - core index']
  #allocation1 [shape = 'u32[144,128]{1,0:T(1,128)}', space=vmem, size = 0x12000, scoped, tag = 'internal scratch']
  #allocation2 [shape = 'f32[1]{0:T(128)S(6)}', space=smem, size = 0x200, scoped, tag = 'scoped memory for tpu_custom_call.1']
  #allocation3 [shape = 's32[1]{0:T(128)S(6)}', space=smem, size = 0x200, scoped, tag = 'scoped memory for tpu_custom_call.1']
  %s0 = inlined_call_operand.<no memory space> [shape: f32[1], index: 0, kind: input, shape index: {}]
  %s1 = inlined_call_operand.<no memory space> [shape: s32[1], index: 1, kind: input, shape index: {}]
  %s2 = inlined_call_operand.vmem [shape: f32[16,128], index: 2, kind: input, shape index: {}]
  %s3 = inlined_call_operand.vmem [shape: f32[1,128], index: 3, kind: input, shape index: {}]
  %s4 = inlined_call_operand.vmem [shape: f32[128,128], index: 4, kind: input, shape index: {}]
  %s5 = inlined_call_operand.vmem [shape: f32[128,16], index: 5, kind: input, shape index: {}]
  %s6 = inlined_call_operand.hbm [shape: f32[16,16], index: 6, kind: output, shape index: {0}]
  %s7 = inlined_call_operand.hbm [shape: f32[1,128], index: 7, kind: output, shape index: {1}]
  %8 = xla_tuple %s6, %s7
  %s9 = sld [smem:[#allocation0]]
  $region42: #{tpu_custom_call.1} parent=0
    _
  %s11 = ssub.s32 1, %s9
  %s12 = scalar_select 0, %s11, %s9
  %13 = sst [smem:[#allocation2]] %s0
  %14 = sst [smem:[#allocation3]] %s1
  $region1: #{tpu_custom_call.1} parent=0
    #allocation4 [shape = 'u8[8192]{0}', space=vmem, size = 0x2000, scoped, tag = 'output window, operand 0, single buffered']
    #allocation5 [shape = 's32[1]{0}', space=sflag, size = 0x4, scoped, tag = 'scoped memory for tpu_custom_call.1']
    #allocation6 [shape = 'u8[512]{0}', space=vmem, size = 0x400, scoped, tag = 'output window, operand 1, single buffered']
    #allocation7 [shape = 's32[1]{0}', space=sflag, size = 0x4, scoped, tag = 'scoped memory for tpu_custom_call.1']
    %15 = vsyncpa [#allocation5], 0
    %16 = vsyncpa [#allocation7], 0
    // Predicated region
    $region2: #{tpu_custom_call.1} parent=1 // pred_check
      _
    $region3: #{tpu_custom_call.1} parent=1 // pred_check_branch
      %18 = sbr.rel (0) target = $region5
    $region4: #{tpu_custom_call.1} parent=1 // pred_region
      _
    $region5: #{tpu_custom_call.1} parent=1 // pred_fallthru
      _
    // Predicated region
    $region6: #{tpu_custom_call.1} parent=1 // pred_check
      _
    $region7: #{tpu_custom_call.1} parent=1 // pred_check_branch
      %20 = sbr.rel (0) target = $region9
    $region8: #{tpu_custom_call.1} parent=1 // pred_region
      _
    $region9: #{tpu_custom_call.1} parent=1 // pred_fallthru
      _
    // Predicated region
    $region10: #{tpu_custom_call.1} parent=1 // pred_check
      _
    $region11: #{tpu_custom_call.1} parent=1 // pred_check_branch
      %22 = sbr.rel (0) target = $region13
    $region12: #{tpu_custom_call.1} parent=1 // pred_region
      _
    $region13: #{tpu_custom_call.1} parent=1 // pred_fallthru
      _
    // Predicated region
    $region14: #{tpu_custom_call.1} parent=1 // pred_check
      _
    $region15: #{tpu_custom_call.1} parent=1 // pred_check_branch
      %24 = sbr.rel (0) target = $region17
    $region16: #{tpu_custom_call.1} parent=1 // pred_region
      _
    $region17: #{tpu_custom_call.1} parent=1 // pred_fallthru
      _
    // Predicated region
    $region18: #{tpu_custom_call.1} parent=1 // pred_check
      _
    $region19: #{tpu_custom_call.1} parent=1 // pred_check_branch
      %26 = sbr.rel (0) target = $region21
    $region20: #{tpu_custom_call.1} parent=1 // pred_region
      _
    $region21: #{tpu_custom_call.1} parent=1 // pred_fallthru
      _
    // Predicated region
    $region22: #{tpu_custom_call.1} parent=1 // pred_check
      _
    $region23: #{tpu_custom_call.1} parent=1 // pred_check_branch
      %28 = sbr.rel (0) target = $region25
    $region24: #{tpu_custom_call.1} parent=1 // pred_region
      _
    $region25: #{tpu_custom_call.1} parent=1 // pred_fallthru
      _
    %v29 = vld [vmem:[%s2] sm:$0xff]
    %v30 = vld [vmem:[%s2 + $0x8] sm:$0xff]
    %v31 = vld [vmem:[%s3] sm:$0x1]
    %v33 = vlaneseq
    %v34 = vshrl.u32 %v33, 7
    %v35 = vsub.s32 0, %v34
    %v36 = vrot.slane %v31, %v35
    %v38 = vsub.f32 %v29, %v36
    %v39 = vsub.f32 %v30, %v36
    %v40 = vld [vmem:[%s4] sm:$0xff]
    %v41 = vld [vmem:[%s4 + $0x8] sm:$0xff]
    %v42 = vld [vmem:[%s4 + $0x10] sm:$0xff]
    %v43 = vld [vmem:[%s4 + $0x18] sm:$0xff]
    %v44 = vld [vmem:[%s4 + $0x20] sm:$0xff]
    %v45 = vld [vmem:[%s4 + $0x28] sm:$0xff]
    %v46 = vld [vmem:[%s4 + $0x30] sm:$0xff]
    %v47 = vld [vmem:[%s4 + $0x38] sm:$0xff]
    %v48 = vld [vmem:[%s4 + $0x40] sm:$0xff]
    %v49 = vld [vmem:[%s4 + $0x48] sm:$0xff]
    %v50 = vld [vmem:[%s4 + $0x50] sm:$0xff]
    %v51 = vld [vmem:[%s4 + $0x58] sm:$0xff]
    %v52 = vld [vmem:[%s4 + $0x60] sm:$0xff]
    %v53 = vld [vmem:[%s4 + $0x68] sm:$0xff]
    %v54 = vld [vmem:[%s4 + $0x70] sm:$0xff]
    %v55 = vld [vmem:[%s4 + $0x78] sm:$0xff]
    %56 = vmatprep.subr.mxu0 0.0
    %57 = vmatpush1.msra.mxu0 %v40
    %58 = vmatprep.subr.mxu0 0.0
    %59 = vmatpush1.msra.mxu0 %v41
    %60 = vmatprep.subr.mxu0 0.0
    %61 = vmatpush1.msra.mxu0 %v42
    %62 = vmatprep.subr.mxu0 0.0
    %63 = vmatpush1.msra.mxu0 %v43
    %64 = vmatprep.subr.mxu0 0.0
    %65 = vmatpush1.msra.mxu0 %v44
    %66 = vmatprep.subr.mxu0 0.0
    %67 = vmatpush1.msra.mxu0 %v45
    %68 = vmatprep.subr.mxu0 0.0
    %69 = vmatpush1.msra.mxu0 %v46
    %70 = vmatprep.subr.mxu0 0.0
    %71 = vmatpush1.msra.mxu0 %v47
    %72 = vmatprep.subr.mxu0 0.0
    %73 = vmatpush1.msra.mxu0 %v48
    %74 = vmatprep.subr.mxu0 0.0
    %75 = vmatpush1.msra.mxu0 %v49
    %76 = vmatprep.subr.mxu0 0.0
    %77 = vmatpush1.msra.mxu0 %v50
    %78 = vmatprep.subr.mxu0 0.0
    %79 = vmatpush1.msra.mxu0 %v51
    %80 = vmatprep.subr.mxu0 0.0
    %81 = vmatpush1.msra.mxu0 %v52
    %82 = vmatprep.subr.mxu0 0.0
    %83 = vmatpush1.msra.mxu0 %v53
    %84 = vmatprep.subr.mxu0 0.0
    %85 = vmatpush1.msra.mxu0 %v54
    %86 = vmatprep.subr.mxu0 0.0
    %87 = vmatpush1.msra.mxu0 %v55
    %88 = vmatprep.subr.mxu0 0.0
    %89 = vmatpush1.msra.mxu0 0.0
    %90 = vmatprep.subr.mxu0 0.0
    %91 = vmatpush1.msra.mxu0 0.0
    %92 = vmatprep.subr.mxu0 0.0
    %93 = vmatpush1.msra.mxu0 0.0
    %94 = vmatprep.subr.mxu0 0.0
    %95 = vmatpush1.msra.mxu0 0.0
    %96 = vmatprep.subr.mxu0 0.0
    %97 = vmatpush1.msra.mxu0 0.0
    %98 = vmatprep.subr.mxu0 0.0
    %99 = vmatpush1.msra.mxu0 0.0
    %100 = vmatprep.subr.mxu0 0.0
    %101 = vmatpush1.msra.mxu0 0.0
    %102 = vmatprep.subr.mxu0 0.0
    %103 = vmatpush1.msra.mxu0 0.0
    %104 = vmatprep.subr.mxu0 0.0
    %105 = vmatpush1.msra.mxu0 0.0
    %106 = vmatprep.subr.mxu0 0.0
    %107 = vmatpush1.msra.mxu0 0.0
    %108 = vmatprep.subr.mxu0 0.0
    %109 = vmatpush1.msra.mxu0 0.0
    %110 = vmatprep.subr.mxu0 0.0
    %111 = vmatpush1.msra.mxu0 0.0
    %112 = vmatprep.subr.mxu0 0.0
    %113 = vmatpush1.msra.mxu0 0.0
    %114 = vmatprep.subr.mxu0 0.0
    %115 = vmatpush1.msra.mxu0 0.0
    %116 = vmatprep.subr.mxu0 0.0
    %117 = vmatpush1.msra.mxu0 0.0
    %118 = vmatprep.subr.mxu0 0.0
    %119 = vmatpush1.msra.mxu0 0.0
    %120 = vmatprep.mubr.f32.mxu0 0.0
    %121 = vmatmul.mubr.f32.gmra.mrb[0].mxu0 %v38
    %v122 = vpop.f32.mrb[0].mxu0
    %v123 = vadd.f32 0.0, %v122
    %v124 = vpop.f32.mrb[0].mxu0
    %125 = vmatprep.mubr.f32.mxu0 0.0
    %126 = vmatmul.mubr.f32.gmra.mrb[0].mxu0 %v39
    %v127 = vpop.f32.mrb[0].mxu0
    %v128 = vadd.f32 0.0, %v127
    %v129 = vpop.f32.mrb[0].mxu0
    %130 = vdwg.mxu0
    %v131 = vmul.f32 %v123, %v123
    %v132 = vmul.f32 %v128, %v128
    %v133 = vld [vmem:[%s5] sm:$0xff]
    %v134 = vld [vmem:[%s5 + $0x8] sm:$0xff]
    %v135 = vld [vmem:[%s5 + $0x10] sm:$0xff]
    %v136 = vld [vmem:[%s5 + $0x18] sm:$0xff]
    %v137 = vld [vmem:[%s5 + $0x20] sm:$0xff]
    %v138 = vld [vmem:[%s5 + $0x28] sm:$0xff]
    %v139 = vld [vmem:[%s5 + $0x30] sm:$0xff]
    %v140 = vld [vmem:[%s5 + $0x38] sm:$0xff]
    %v141 = vld [vmem:[%s5 + $0x40] sm:$0xff]
    %v142 = vld [vmem:[%s5 + $0x48] sm:$0xff]
    %v143 = vld [vmem:[%s5 + $0x50] sm:$0xff]
    %v144 = vld [vmem:[%s5 + $0x58] sm:$0xff]
    %v145 = vld [vmem:[%s5 + $0x60] sm:$0xff]
    %v146 = vld [vmem:[%s5 + $0x68] sm:$0xff]
    %v147 = vld [vmem:[%s5 + $0x70] sm:$0xff]
    %v148 = vld [vmem:[%s5 + $0x78] sm:$0xff]
    %149 = vmatprep.subr.mxu0 0.0
    %150 = vmatpush1.msra.mxu0 %v133
    %151 = vmatprep.subr.mxu0 0.0
    %152 = vmatpush1.msra.mxu0 %v134
    %153 = vmatprep.subr.mxu0 0.0
    %154 = vmatpush1.msra.mxu0 %v135
    %155 = vmatprep.subr.mxu0 0.0
    %156 = vmatpush1.msra.mxu0 %v136
    %157 = vmatprep.subr.mxu0 0.0
    %158 = vmatpush1.msra.mxu0 %v137
    %159 = vmatprep.subr.mxu0 0.0
    %160 = vmatpush1.msra.mxu0 %v138
    %161 = vmatprep.subr.mxu0 0.0
    %162 = vmatpush1.msra.mxu0 %v139
    %163 = vmatprep.subr.mxu0 0.0
    %164 = vmatpush1.msra.mxu0 %v140
    %165 = vmatprep.subr.mxu0 0.0
    %166 = vmatpush1.msra.mxu0 %v141
    %167 = vmatprep.subr.mxu0 0.0
    %168 = vmatpush1.msra.mxu0 %v142
    %169 = vmatprep.subr.mxu0 0.0
    %170 = vmatpush1.msra.mxu0 %v143
    %171 = vmatprep.subr.mxu0 0.0
    %172 = vmatpush1.msra.mxu0 %v144
    %173 = vmatprep.subr.mxu0 0.0
    %174 = vmatpush1.msra.mxu0 %v145
    %175 = vmatprep.subr.mxu0 0.0
    %176 = vmatpush1.msra.mxu0 %v146
    %177 = vmatprep.subr.mxu0 0.0
    %178 = vmatpush1.msra.mxu0 %v147
    %179 = vmatprep.subr.mxu0 0.0
    %180 = vmatpush1.msra.mxu0 %v148
    %181 = vmatprep.subr.mxu0 0.0
    %182 = vmatpush1.msra.mxu0 0.0
    %183 = vmatprep.subr.mxu0 0.0
    %184 = vmatpush1.msra.mxu0 0.0
    %185 = vmatprep.subr.mxu0 0.0
    %186 = vmatpush1.msra.mxu0 0.0
    %187 = vmatprep.subr.mxu0 0.0
    %188 = vmatpush1.msra.mxu0 0.0
    %189 = vmatprep.subr.mxu0 0.0
    %190 = vmatpush1.msra.mxu0 0.0
    %191 = vmatprep.subr.mxu0 0.0
    %192 = vmatpush1.msra.mxu0 0.0
    %193 = vmatprep.subr.mxu0 0.0
    %194 = vmatpush1.msra.mxu0 0.0
    %195 = vmatprep.subr.mxu0 0.0
    %196 = vmatpush1.msra.mxu0 0.0
    %197 = vmatprep.subr.mxu0 0.0
    %198 = vmatpush1.msra.mxu0 0.0
    %199 = vmatprep.subr.mxu0 0.0
    %200 = vmatpush1.msra.mxu0 0.0
    %201 = vmatprep.subr.mxu0 0.0
    %202 = vmatpush1.msra.mxu0 0.0
    %203 = vmatprep.subr.mxu0 0.0
    %204 = vmatpush1.msra.mxu0 0.0
    %205 = vmatprep.subr.mxu0 0.0
    %206 = vmatpush1.msra.mxu0 0.0
    %207 = vmatprep.subr.mxu0 0.0
    %208 = vmatpush1.msra.mxu0 0.0
    %209 = vmatprep.subr.mxu0 0.0
    %210 = vmatpush1.msra.mxu0 0.0
    %211 = vmatprep.subr.mxu0 0.0
    %212 = vmatpush1.msra.mxu0 0.0
    %213 = vmatprep.mubr.f32.mxu0 0.0
    %214 = vmatmul.mubr.f32.gmra.mrb[0].mxu0 %v131
    %v215 = vpop.f32.mrb[0].mxu0
    %v216 = vadd.f32 0.0, %v215
    %v217 = vpop.f32.mrb[0].mxu0
    %218 = vmatprep.mubr.f32.mxu0 0.0
    %219 = vmatmul.mubr.f32.gmra.mrb[0].mxu0 %v132
    %v220 = vpop.f32.mrb[0].mxu0
    %v221 = vadd.f32 0.0, %v220
    %v222 = vpop.f32.mrb[0].mxu0
    %223 = vdwg.mxu0
    %v224 = vmul.f32 %v216, -0.5
    %v225 = vmul.f32 %v221, -0.5
    %s226 = sld [smem:[#allocation2]]
    %v227 = vstv %s226
    %v228 = vadd.f32 %v224, %v227
    %v229 = vadd.f32 %v225, %v227
    %vm230 = vcmask 130048
    %231 = vst.msk [vmem:[#allocation4] sm:$0xff] %vm230, %v228
    %232 = vst.msk [vmem:[#allocation4 + $0x8] sm:$0xff] %vm230, %v229
    %v233 = vlaneseq
    %v234 = vshrl.u32 %v233, 7
    %v235 = vadd.s32 %v234, 8
    %v236 = vlaneseq
    %v237 = vand.u32 %v236, 127
    %s238 = smul.u32 0, 16
    %v239 = vstv %s238
    %v240 = vadd.s32 %v239, %v234
    %v241 = vadd.s32 %v239, %v235
    %v242 = vmul.u32 %v240, 16
    %v243 = vmul.u32 %v241, 16
    %v244 = vadd.s32 %v242, %v237
    %v245 = vadd.s32 %v243, %v237
    %s246 = sld [smem:[#allocation3]]
    %v247 = vstv %s246
    %vm248 = vcmp.lt.s32.totalorder %v244, %v247
    %vm249 = vcmp.lt.s32.totalorder %v245, %v247
    %v250 = vsel %vm248, %v228, -inf
    %v251 = vsel %vm249, %v229, -inf
    %v252 = vsel %vm230, %v250, -inf
    %253 = vmax.xlane.f32.xlu0 %v252
    %v254 = vpop.xlane.xlu0 %253
    %v255 = vsel %vm230, %v251, -inf
    %256 = vmax.xlane.f32.xlu0 %v255
    %v257 = vpop.xlane.xlu0 %256
    %v258 = vmax.f32 %v254, %v257
    %v259 = vrot.slane %v258, 4
    %v260 = vmax.f32 %v258, %v259
    %v261 = vrot.slane %v260, 2
    %v262 = vmax.f32 %v260, %v261
    %v263 = vrot.slane %v262, 1
    %v264 = vmax.f32 %v262, %v263
    %265 = vst [vmem:[#allocation6] sm:$0x1] %v264
    // Predicated region
    $region26: #{tpu_custom_call.1} parent=1 // pred_check
      _
    $region27: #{tpu_custom_call.1} parent=1 // pred_check_branch
      %267 = sbr.rel (0) target = $region29
    $region28: #{tpu_custom_call.1} parent=1 // pred_region
      %s269 = ssub.s32 256, 256
      %270 = vsyncadd [#allocation5], %s269
      %s271 = sshll.u32 [#allocation4], 4
      %s272 = int_to_ptr.vmem [resolvable:$true] %s271
      %277 = dma.vmem_to_hbm [thread:$0]  %s272, 256, %s6, [#allocation5], 128, 128, 8
    $region29: #{tpu_custom_call.1} parent=1 // pred_fallthru
      _
    // Predicated region
    $region30: #{tpu_custom_call.1} parent=1 // pred_check
      _
    $region31: #{tpu_custom_call.1} parent=1 // pred_check_branch
      %279 = sbr.rel (0) target = $region33
    $region32: #{tpu_custom_call.1} parent=1 // pred_region
      %s281 = ssub.s32 16, 16
      %282 = vsyncadd [#allocation7], %s281
      %s284 = sshll.u32 [#allocation6], 4
      %s285 = int_to_ptr.vmem [resolvable:$true] %s284
      %287 = dma.vmem_to_hbm [thread:$0]  %s285, 16, %s7, [#allocation7]
    $region33: #{tpu_custom_call.1} parent=1 // pred_fallthru
      _
    // Predicated region
    $region34: #{tpu_custom_call.1} parent=1 // pred_check
      _
    $region35: #{tpu_custom_call.1} parent=1 // pred_check_branch
      %289 = sbr.rel (0) target = $region37
    $region36: #{tpu_custom_call.1} parent=1 // pred_region
      %290 = dma.done [#allocation5], 256
    $region37: #{tpu_custom_call.1} parent=1 // pred_fallthru
      _
    // Predicated region
    $region38: #{tpu_custom_call.1} parent=1 // pred_check
      _
    $region39: #{tpu_custom_call.1} parent=1 // pred_check_branch
      %292 = sbr.rel (0) target = $region41
    $region40: #{tpu_custom_call.1} parent=1 // pred_region
      %293 = dma.done [#allocation7], 16
    $region41: #{tpu_custom_call.1} parent=1 // pred_fallthru
      _
    %294 = vsyncpa [#allocation5], 1
    %295 = vsyncpa [#allocation7], 1

</llo_original>
